<compile_context>
chip_gen: v5e
topology: v5e:2x2
jax: 0.10.0
libtpu: 0.0.40
codegen_flags: <defaults>
</compile_context>

<pallas_src>
import jax
import jax.numpy as jnp
from jax.experimental import pallas as pl
from jax.experimental.pallas import tpu as pltpu

INPUT_SIZE = 21 * 3   # 63
HIDDEN1 = 128
HIDDEN2 = 64
NUM_CLASSES = 10

SUBLANE = 16          # multiple of both f32 (8) and bf16 (16) sublane packing


def _round_up(n, m):
    return ((n + m - 1) // m) * m


def _mlp_kernel(x_ref, w1_ref, b1_ref, w2_ref, b2_ref, w3_ref, b3_ref, o_ref):
    # Linear(63, 128) + ReLU.  MXU in operand dtype, f32 accumulation.
    h1 = jnp.dot(x_ref[...], w1_ref[...], preferred_element_type=jnp.float32)
    h1 = jnp.maximum(h1 + b1_ref[...], 0.0)                  # f32 elementwise tail
    # Dropout(0.2) -> identity at inference.
    # Linear(128, 64) + ReLU.  (bf16 path downcasts h1 here -- intentional.)
    h2 = jnp.dot(h1.astype(w2_ref.dtype), w2_ref[...],
                 preferred_element_type=jnp.float32)
    h2 = jnp.maximum(h2 + b2_ref[...], 0.0)
    # Dropout(0.2) -> identity at inference.
    # Linear(64, num_classes).  Output block equals full last dim (masked vst).
    out = jnp.dot(h2.astype(w3_ref.dtype), w3_ref[...],
                  preferred_element_type=jnp.float32)
    o_ref[...] = (out + b3_ref[...]).astype(o_ref.dtype)


def hand_sign_net_forward(x, params, *, tile_b=4096):
    """x: (B, 63), f32 or bf16 (caller-side dtype contract).
    params: dict of weights (stored (in, out)) and biases (stored (1, out)).
    Returns (B, num_classes) float32 logits.
    """
    B, in_features = x.shape
    assert in_features == INPUT_SIZE, in_features
    num_classes = params["w3"].shape[1]

    # dtype contract: f32 x -> f32 MXU operands; bf16 x -> bf16 MXU operands.
    # Only the tiny one-time weights are cast; biases stay f32 (f32 tail).
    op_dtype = x.dtype
    w1 = params["w1"].astype(op_dtype)     # (63, 128)
    w2 = params["w2"].astype(op_dtype)     # (128, 64)
    w3 = params["w3"].astype(op_dtype)     # (64, num_classes)
    b1 = params["b1"].astype(jnp.float32)  # (1, 128)
    b2 = params["b2"].astype(jnp.float32)  # (1, 64)
    b3 = params["b3"].astype(jnp.float32)  # (1, num_classes)

    # ---- tile / grid selection (no batch padding: ragged final tile OK) ----
    TB = max(SUBLANE, min(_round_up(tile_b, SUBLANE), _round_up(B, SUBLANE)))
    grid = (pl.cdiv(B, TB),)

    # ---- VMEM bookkeeping: x(2 buf) + out(2 buf) + h1/h2 + resident weights ----
    itemsize = jnp.dtype(op_dtype).itemsize
    est_vmem = TB * (2 * INPUT_SIZE * itemsize          # x double-buffer
                     + 2 * num_classes * 4              # out double-buffer (f32)
                     + (HIDDEN1 + HIDDEN2) * 4)         # h1/h2 intermediates (f32)
    est_vmem += 2 * (INPUT_SIZE * HIDDEN1 + HIDDEN1 * HIDDEN2
                     + HIDDEN2 * num_classes) * itemsize
    vmem_limit = None
    if est_vmem > 12 * 1024 * 1024:                     # above v5e's 16 MiB default margin
        vmem_limit = int(min(2 * est_vmem, 48 * 1024 * 1024))  # < v7x 64 MiB physical

    # ---- advisory cost estimate for XLA scheduling around the custom call ----
    cost = pl.CostEstimate(
        flops=2 * B * (INPUT_SIZE * HIDDEN1 + HIDDEN1 * HIDDEN2
                       + HIDDEN2 * num_classes),
        transcendentals=0,
        bytes_accessed=B * (INPUT_SIZE * itemsize + num_classes * 4)
                       + (INPUT_SIZE * HIDDEN1 + HIDDEN1 * HIDDEN2
                          + HIDDEN2 * num_classes) * itemsize
                       + (HIDDEN1 + HIDDEN2 + num_classes) * 4,
    )

    out = pl.pallas_call(
        _mlp_kernel,
        out_shape=jax.ShapeDtypeStruct((B, num_classes), jnp.float32),
        grid_spec=pltpu.PrefetchScalarGridSpec(
            num_scalar_prefetch=0,
            grid=grid,
            in_specs=[
                # x: pipelined batch tile (double-buffered by Pallas), unpadded K=63.
                pl.BlockSpec((TB, INPUT_SIZE), lambda i: (i, 0)),
                # weights/biases: constant block index -> DMA'd once, resident.
                pl.BlockSpec((INPUT_SIZE, HIDDEN1), lambda i: (0, 0)),
                pl.BlockSpec((1, HIDDEN1), lambda i: (0, 0)),
                pl.BlockSpec((HIDDEN1, HIDDEN2), lambda i: (0, 0)),
                pl.BlockSpec((1, HIDDEN2), lambda i: (0, 0)),
                pl.BlockSpec((HIDDEN2, num_classes), lambda i: (0, 0)),
                pl.BlockSpec((1, num_classes), lambda i: (0, 0)),
            ],
            out_specs=pl.BlockSpec((TB, num_classes), lambda i: (i, 0)),
        ),
        compiler_params=pltpu.CompilerParams(
            dimension_semantics=("parallel",),   # 2-TC sharding on v7x
            vmem_limit_bytes=vmem_limit),
        cost_estimate=cost,
    )(x, w1, b1, w2, b2, w3, b3)

    return out


def init_params(key, num_classes=NUM_CLASSES):
    """Deterministic synthetic parameters matching nn.Linear shapes (stored transposed)."""
    k1, k2, k3, k4, k5, k6 = jax.random.split(key, 6)
    # PyTorch nn.Linear(in, out) weight is (out, in); we store (in, out) for x @ W.
    w1 = jax.random.normal(k1, (INPUT_SIZE, HIDDEN1), jnp.float32) * (1.0 / INPUT_SIZE ** 0.5)
    b1 = jax.random.normal(k2, (1, HIDDEN1), jnp.float32) * 0.01
    w2 = jax.random.normal(k3, (HIDDEN1, HIDDEN2), jnp.float32) * (1.0 / HIDDEN1 ** 0.5)
    b2 = jax.random.normal(k4, (1, HIDDEN2), jnp.float32) * 0.01
    w3 = jax.random.normal(k5, (HIDDEN2, num_classes), jnp.float32) * (1.0 / HIDDEN2 ** 0.5)
    b3 = jax.random.normal(k6, (1, num_classes), jnp.float32) * 0.01
    return {"w1": w1, "b1": b1, "w2": w2, "b2": b2, "w3": w3, "b3": b3}


def reference_forward(x, params):
    h1 = jnp.maximum(x @ params["w1"] + params["b1"], 0.0)
    h2 = jnp.maximum(h1 @ params["w2"] + params["b2"], 0.0)
    return h2 @ params["w3"] + params["b3"]


if __name__ == "__main__":
    key = jax.random.PRNGKey(0)
    k_params, k_x1, k_x2 = jax.random.split(key, 3)

    params = init_params(k_params, NUM_CLASSES)

    # Small serving-style batch: single grid step, partial-tile masked writeback.
    B_small = 8
    x_small = jax.random.normal(k_x1, (B_small, INPUT_SIZE), jnp.float32)
    out_small = jax.block_until_ready(hand_sign_net_forward(x_small, params))
    ref_small = reference_forward(x_small, params)
    assert out_small.shape == (B_small, NUM_CLASSES), out_small.shape
    assert jnp.allclose(out_small, ref_small, atol=1e-4, rtol=1e-4), "f32 mismatch (small)"

    # Multi-tile case with a ragged final tile (200 = 3*64 + 8): exercises the
    # batch grid, OOB-read padding / masked OOB writeback, and resident weights.
    B_big = 200
    x_big = jax.random.normal(k_x2, (B_big, INPUT_SIZE), jnp.float32)
    out_big = jax.block_until_ready(hand_sign_net_forward(x_big, params, tile_b=64))
    ref_big = reference_forward(x_big, params)
    assert out_big.shape == (B_big, NUM_CLASSES), out_big.shape
    assert jnp.allclose(out_big, ref_big, atol=1e-4, rtol=1e-4), "f32 mismatch (big)"

    # bf16 caller-side contract: x arrives already in bf16, only weights are cast.
    out_bf16 = jax.block_until_ready(
        hand_sign_net_forward(x_big.astype(jnp.bfloat16), params, tile_b=64))
    assert out_bf16.shape == (B_big, NUM_CLASSES), out_bf16.shape
    assert jnp.allclose(out_bf16, ref_big, atol=5e-2, rtol=5e-2), "bf16 mismatch"

    print("KERNEL_OK")
</pallas_src>

<mosaic_0001>
module attributes {stable_mosaic.version = 11 : i64} {
  func.func @_mlp_kernel(%arg0: i32, %arg1: memref<16x63xf32, #tpu.memory_space<vmem>>, %arg2: memref<63x128xf32, #tpu.memory_space<vmem>>, %arg3: memref<1x128xf32, #tpu.memory_space<vmem>>, %arg4: memref<128x64xf32, #tpu.memory_space<vmem>>, %arg5: memref<1x64xf32, #tpu.memory_space<vmem>>, %arg6: memref<64x10xf32, #tpu.memory_space<vmem>>, %arg7: memref<1x10xf32, #tpu.memory_space<vmem>>, %arg8: memref<16x10xf32, #tpu.memory_space<vmem>>) attributes {dimension_semantics = [#tpu.dimension_semantics<parallel>], iteration_bounds = array<i64: 1>, scalar_prefetch = 0 : i64, scratch_operands = 0 : i64, tpu.core_type = #tpu.core_type<tc>, window_params = [{transform_indices = @transform_0, window_bounds = array<i64: 16, 63>}, {pipeline_mode = #tpu.pipeline_mode<synchronous>, transform_indices = @transform_1, window_bounds = array<i64: 63, 128>}, {pipeline_mode = #tpu.pipeline_mode<synchronous>, transform_indices = @transform_2, window_bounds = array<i64: 1, 128>}, {pipeline_mode = #tpu.pipeline_mode<synchronous>, transform_indices = @transform_3, window_bounds = array<i64: 128, 64>}, {pipeline_mode = #tpu.pipeline_mode<synchronous>, transform_indices = @transform_4, window_bounds = array<i64: 1, 64>}, {pipeline_mode = #tpu.pipeline_mode<synchronous>, transform_indices = @transform_5, window_bounds = array<i64: 64, 10>}, {pipeline_mode = #tpu.pipeline_mode<synchronous>, transform_indices = @transform_6, window_bounds = array<i64: 1, 10>}, {transform_indices = @transform_7, window_bounds = array<i64: 16, 10>}]} {
    %c0 = arith.constant 0 : index
    %c0_0 = arith.constant 0 : index
    %0 = vector.load %arg1[%c0, %c0_0] : memref<16x63xf32, #tpu.memory_space<vmem>>, vector<16x63xf32>
    %c0_1 = arith.constant 0 : index
    %c0_2 = arith.constant 0 : index
    %1 = vector.load %arg2[%c0_1, %c0_2] : memref<63x128xf32, #tpu.memory_space<vmem>>, vector<63x128xf32>
    %cst = arith.constant dense<0.000000e+00> : vector<16x128xf32>
    %2 = tpu.matmul %0, %1, %cst {dimension_numbers = #tpu.dot_dimension_numbers<[1], [0], [0], [1], [0, 0, 1, 1], [], []>} : vector<16x63xf32>, vector<63x128xf32>, vector<16x128xf32> -> vector<16x128xf32>
    %c0_3 = arith.constant 0 : index
    %c0_4 = arith.constant 0 : index
    %3 = vector.load %arg3[%c0_3, %c0_4] : memref<1x128xf32, #tpu.memory_space<vmem>>, vector<1x128xf32>
    %4 = vector.broadcast %3 : vector<1x128xf32> to vector<16x128xf32>
    %5 = arith.addf %2, %4 : vector<16x128xf32>
    %cst_5 = arith.constant 0.000000e+00 : f32
    %6 = vector.broadcast %cst_5 : f32 to vector<16x128xf32>
    %7 = arith.maximumf %5, %6 : vector<16x128xf32>
    %c0_6 = arith.constant 0 : index
    %c0_7 = arith.constant 0 : index
    %8 = vector.load %arg4[%c0_6, %c0_7] : memref<128x64xf32, #tpu.memory_space<vmem>>, vector<128x64xf32>
    %cst_8 = arith.constant dense<0.000000e+00> : vector<16x64xf32>
    %9 = tpu.matmul %7, %8, %cst_8 {dimension_numbers = #tpu.dot_dimension_numbers<[1], [0], [0], [1], [0, 0, 1, 1], [], []>} : vector<16x128xf32>, vector<128x64xf32>, vector<16x64xf32> -> vector<16x64xf32>
    %c0_9 = arith.constant 0 : index
    %c0_10 = arith.constant 0 : index
    %10 = vector.load %arg5[%c0_9, %c0_10] : memref<1x64xf32, #tpu.memory_space<vmem>>, vector<1x64xf32>
    %11 = vector.broadcast %10 : vector<1x64xf32> to vector<16x64xf32>
    %12 = arith.addf %9, %11 : vector<16x64xf32>
    %cst_11 = arith.constant 0.000000e+00 : f32
    %13 = vector.broadcast %cst_11 : f32 to vector<16x64xf32>
    %14 = arith.maximumf %12, %13 : vector<16x64xf32>
    %c0_12 = arith.constant 0 : index
    %c0_13 = arith.constant 0 : index
    %15 = vector.load %arg6[%c0_12, %c0_13] : memref<64x10xf32, #tpu.memory_space<vmem>>, vector<64x10xf32>
    %cst_14 = arith.constant dense<0.000000e+00> : vector<16x10xf32>
    %16 = tpu.matmul %14, %15, %cst_14 {dimension_numbers = #tpu.dot_dimension_numbers<[1], [0], [0], [1], [0, 0, 1, 1], [], []>} : vector<16x64xf32>, vector<64x10xf32>, vector<16x10xf32> -> vector<16x10xf32>
    %c0_15 = arith.constant 0 : index
    %c0_16 = arith.constant 0 : index
    %17 = vector.load %arg7[%c0_15, %c0_16] : memref<1x10xf32, #tpu.memory_space<vmem>>, vector<1x10xf32>
    %18 = vector.broadcast %17 : vector<1x10xf32> to vector<16x10xf32>
    %19 = arith.addf %16, %18 : vector<16x10xf32>
    %c0_17 = arith.constant 0 : index
    %c0_18 = arith.constant 0 : index
    %20 = vector.load %arg8[%c0_17, %c0_18] : memref<16x10xf32, #tpu.memory_space<vmem>>, vector<16x10xf32>
    tpu.vector_store %arg8[%c0_17, %c0_18], %19 {strides = array<i32>} : memref<16x10xf32, #tpu.memory_space<vmem>>, vector<16x10xf32>,
    return
  }
  func.func @transform_0(%arg0: i32) -> (i32, i32) {
    %c0_i32 = arith.constant 0 : i32
    %c0_i32_0 = arith.constant 0 : i32
    return %arg0, %c0_i32 : i32, i32
  }
  func.func @transform_1(%arg0: i32) -> (i32, i32) {
    %c0_i32 = arith.constant 0 : i32
    %c0_i32_0 = arith.constant 0 : i32
    %c0_i32_1 = arith.constant 0 : i32
    return %c0_i32, %c0_i32_0 : i32, i32
  }
  func.func @transform_2(%arg0: i32) -> (i32, i32) {
    %c0_i32 = arith.constant 0 : i32
    %c0_i32_0 = arith.constant 0 : i32
    %c0_i32_1 = arith.constant 0 : i32
    return %c0_i32, %c0_i32_0 : i32, i32
  }
  func.func @transform_3(%arg0: i32) -> (i32, i32) {
    %c0_i32 = arith.constant 0 : i32
    %c0_i32_0 = arith.constant 0 : i32
    %c0_i32_1 = arith.constant 0 : i32
    return %c0_i32, %c0_i32_0 : i32, i32
  }
  func.func @transform_4(%arg0: i32) -> (i32, i32) {
    %c0_i32 = arith.constant 0 : i32
    %c0_i32_0 = arith.constant 0 : i32
    %c0_i32_1 = arith.constant 0 : i32
    return %c0_i32, %c0_i32_0 : i32, i32
  }
  func.func @transform_5(%arg0: i32) -> (i32, i32) {
    %c0_i32 = arith.constant 0 : i32
    %c0_i32_0 = arith.constant 0 : i32
    %c0_i32_1 = arith.constant 0 : i32
    return %c0_i32, %c0_i32_0 : i32, i32
  }
  func.func @transform_6(%arg0: i32) -> (i32, i32) {
    %c0_i32 = arith.constant 0 : i32
    %c0_i32_0 = arith.constant 0 : i32
    %c0_i32_1 = arith.constant 0 : i32
    return %c0_i32, %c0_i32_0 : i32, i32
  }
  func.func @transform_7(%arg0: i32) -> (i32, i32) {
    %c0_i32 = arith.constant 0 : i32
    %c0_i32_0 = arith.constant 0 : i32
    return %arg0, %c0_i32 : i32, i32
  }
}

</mosaic_0001>

<llo_original>
// kernel: tpu_custom_call.1
$region0: #{tpu_custom_call.1}
  #allocation0 [shape = 'u32[]', space=smem, size = 0x4, offset = 0x4, fixed_abs, tag = 'smem constant byte address 0x4 - core index']
  #allocation1 [shape = 'u32[72,128]{1,0:T(1,128)}', space=vmem, size = 0x9000, scoped, tag = 'internal scratch']
  %s0 = inlined_call_operand.vmem [shape: f32[8,63], index: 0, kind: input, shape index: {}]
  %s1 = inlined_call_operand.vmem [shape: f32[63,128], index: 1, kind: input, shape index: {}]
  %s2 = inlined_call_operand.vmem [shape: f32[1,128], index: 2, kind: input, shape index: {}]
  %s3 = inlined_call_operand.vmem [shape: f32[128,64], index: 3, kind: input, shape index: {}]
  %s4 = inlined_call_operand.vmem [shape: f32[1,64], index: 4, kind: input, shape index: {}]
  %s5 = inlined_call_operand.vmem [shape: f32[64,10], index: 5, kind: input, shape index: {}]
  %s6 = inlined_call_operand.vmem [shape: f32[1,10], index: 6, kind: input, shape index: {}]
  %s7 = inlined_call_operand.hbm [shape: f32[8,10], index: 7, kind: output, shape index: {}]
  %s8 = sld [smem:[#allocation0]]
  $region38: #{tpu_custom_call.1} parent=0
    _
  %s10 = ssub.s32 1, %s8
  %s11 = scalar_select 0, %s10, %s8
  $region1: #{tpu_custom_call.1} parent=0
    #allocation2 [shape = 'u8[8192]{0}', space=vmem, size = 0x2000, scoped, tag = 'output window, operand 0, single buffered']
    #allocation3 [shape = 's32[1]{0}', space=sflag, size = 0x4, scoped, tag = 'scoped memory for tpu_custom_call.1']
    %12 = vsyncpa [#allocation3], 0
    // Predicated region
    $region2: #{tpu_custom_call.1} parent=1 // pred_check
      _
    $region3: #{tpu_custom_call.1} parent=1 // pred_check_branch
      %14 = sbr.rel (0) target = $region5
    $region4: #{tpu_custom_call.1} parent=1 // pred_region
      _
    $region5: #{tpu_custom_call.1} parent=1 // pred_fallthru
      _
    // Predicated region
    $region6: #{tpu_custom_call.1} parent=1 // pred_check
      _
    $region7: #{tpu_custom_call.1} parent=1 // pred_check_branch
      %16 = sbr.rel (0) target = $region9
    $region8: #{tpu_custom_call.1} parent=1 // pred_region
      _
    $region9: #{tpu_custom_call.1} parent=1 // pred_fallthru
      _
    // Predicated region
    $region10: #{tpu_custom_call.1} parent=1 // pred_check
      _
    $region11: #{tpu_custom_call.1} parent=1 // pred_check_branch
      %18 = sbr.rel (0) target = $region13
    $region12: #{tpu_custom_call.1} parent=1 // pred_region
      _
    $region13: #{tpu_custom_call.1} parent=1 // pred_fallthru
      _
    // Predicated region
    $region14: #{tpu_custom_call.1} parent=1 // pred_check
      _
    $region15: #{tpu_custom_call.1} parent=1 // pred_check_branch
      %20 = sbr.rel (0) target = $region17
    $region16: #{tpu_custom_call.1} parent=1 // pred_region
      _
    $region17: #{tpu_custom_call.1} parent=1 // pred_fallthru
      _
    // Predicated region
    $region18: #{tpu_custom_call.1} parent=1 // pred_check
      _
    $region19: #{tpu_custom_call.1} parent=1 // pred_check_branch
      %22 = sbr.rel (0) target = $region21
    $region20: #{tpu_custom_call.1} parent=1 // pred_region
      _
    $region21: #{tpu_custom_call.1} parent=1 // pred_fallthru
      _
    // Predicated region
    $region22: #{tpu_custom_call.1} parent=1 // pred_check
      _
    $region23: #{tpu_custom_call.1} parent=1 // pred_check_branch
      %24 = sbr.rel (0) target = $region25
    $region24: #{tpu_custom_call.1} parent=1 // pred_region
      _
    $region25: #{tpu_custom_call.1} parent=1 // pred_fallthru
      _
    // Predicated region
    $region26: #{tpu_custom_call.1} parent=1 // pred_check
      _
    $region27: #{tpu_custom_call.1} parent=1 // pred_check_branch
      %26 = sbr.rel (0) target = $region29
    $region28: #{tpu_custom_call.1} parent=1 // pred_region
      _
    $region29: #{tpu_custom_call.1} parent=1 // pred_fallthru
      _
    %v27 = vld [vmem:[%s0] sm:$0xff]
    %v28 = vld [vmem:[%s0 + $0x8] sm:$0xff]
    %v29 = vld [vmem:[%s1] sm:$0xff]
    %v30 = vld [vmem:[%s1 + $0x8] sm:$0xff]
    %v31 = vld [vmem:[%s1 + $0x10] sm:$0xff]
    %v32 = vld [vmem:[%s1 + $0x18] sm:$0xff]
    %v33 = vld [vmem:[%s1 + $0x20] sm:$0xff]
    %v34 = vld [vmem:[%s1 + $0x28] sm:$0xff]
    %v35 = vld [vmem:[%s1 + $0x30] sm:$0xff]
    %v36 = vld [vmem:[%s1 + $0x38] sm:$0x7f]
    %v37 = vld [vmem:[%s2] sm:$0x1]
    %v39 = vperm.slane %v37, 0
    %vm41 = vcmask 515072
    %v43 = vsel %vm41, %v27, 0
    %v46 = vsel %vm41, %v28, 0
    %vm48 = vcmask 1046528
    %v50 = vsel %vm48, %v36, 0
    %52 = vmatpush.msra.mxu0 0.0
    %53 = vmatpush.msra.mxu0 0.0
    %54 = vmatpush.msra.mxu0 0.0
    %55 = vmatpush.msra.mxu0 0.0
    %56 = vmatpush.msra.mxu0 0.0
    %57 = vmatpush.msra.mxu0 0.0
    %58 = vmatpush.msra.mxu0 0.0
    %59 = vmatpush.msra.mxu0 0.0
    %60 = vmatpush.msra.mxu0 %v50
    %61 = vmatpush.msra.mxu0 %v35
    %62 = vmatpush.msra.mxu0 %v34
    %63 = vmatpush.msra.mxu0 %v33
    %64 = vmatpush.msra.mxu0 %v32
    %65 = vmatpush.msra.mxu0 %v31
    %66 = vmatpush.msra.mxu0 %v30
    %67 = vmatpush.msra.mxu0 %v29
    %68 = vmatmul.f32.gmra.mxu0 %v43
    %v69 = vpop.f32.mrf.mxu0
    %v70 = vadd.f32 %v39, %v69
    %71 = vmatmul.f32.gmra.mxu0 %v46
    %v72 = vpop.f32.mrf.mxu0
    %v73 = vadd.f32 %v39, %v72
    %74 = vdwg.mxu0
    %v75 = vmax.f32 %v70, 0.0
    %v76 = vmax.f32 %v73, 0.0
    %v77 = vld [vmem:[%s3] sm:$0xff]
    %v78 = vld [vmem:[%s3 + $0x8] sm:$0xff]
    %v79 = vld [vmem:[%s3 + $0x10] sm:$0xff]
    %v80 = vld [vmem:[%s3 + $0x18] sm:$0xff]
    %v81 = vld [vmem:[%s3 + $0x20] sm:$0xff]
    %v82 = vld [vmem:[%s3 + $0x28] sm:$0xff]
    %v83 = vld [vmem:[%s3 + $0x30] sm:$0xff]
    %v84 = vld [vmem:[%s3 + $0x38] sm:$0xff]
    %v85 = vld [vmem:[%s3 + $0x40] sm:$0xff]
    %v86 = vld [vmem:[%s3 + $0x48] sm:$0xff]
    %v87 = vld [vmem:[%s3 + $0x50] sm:$0xff]
    %v88 = vld [vmem:[%s3 + $0x58] sm:$0xff]
    %v89 = vld [vmem:[%s3 + $0x60] sm:$0xff]
    %v90 = vld [vmem:[%s3 + $0x68] sm:$0xff]
    %v91 = vld [vmem:[%s3 + $0x70] sm:$0xff]
    %v92 = vld [vmem:[%s3 + $0x78] sm:$0xff]
    %v93 = vld [vmem:[%s4] sm:$0x1]
    %v95 = vperm.slane %v93, 0
    %97 = vmatpush.msra.mxu0 %v92
    %98 = vmatpush.msra.mxu0 %v91
    %99 = vmatpush.msra.mxu0 %v90
    %100 = vmatpush.msra.mxu0 %v89
    %101 = vmatpush.msra.mxu0 %v88
    %102 = vmatpush.msra.mxu0 %v87
    %103 = vmatpush.msra.mxu0 %v86
    %104 = vmatpush.msra.mxu0 %v85
    %105 = vmatpush.msra.mxu0 %v84
    %106 = vmatpush.msra.mxu0 %v83
    %107 = vmatpush.msra.mxu0 %v82
    %108 = vmatpush.msra.mxu0 %v81
    %109 = vmatpush.msra.mxu0 %v80
    %110 = vmatpush.msra.mxu0 %v79
    %111 = vmatpush.msra.mxu0 %v78
    %112 = vmatpush.msra.mxu0 %v77
    %113 = vmatmul.f32.gmra.mxu0 %v75
    %v114 = vpop.f32.mrf.mxu0
    %v115 = vadd.f32 %v95, %v114
    %116 = vmatmul.f32.gmra.mxu0 %v76
    %v117 = vpop.f32.mrf.mxu0
    %v118 = vadd.f32 %v95, %v117
    %119 = vdwg.mxu0
    %v120 = vmax.f32 %v115, 0.0
    %v121 = vmax.f32 %v118, 0.0
    %v122 = vld [vmem:[%s5] sm:$0xff]
    %v123 = vld [vmem:[%s5 + $0x8] sm:$0xff]
    %v124 = vld [vmem:[%s5 + $0x10] sm:$0xff]
    %v125 = vld [vmem:[%s5 + $0x18] sm:$0xff]
    %v126 = vld [vmem:[%s5 + $0x20] sm:$0xff]
    %v127 = vld [vmem:[%s5 + $0x28] sm:$0xff]
    %v128 = vld [vmem:[%s5 + $0x30] sm:$0xff]
    %v129 = vld [vmem:[%s5 + $0x38] sm:$0xff]
    %v130 = vld [vmem:[%s6] sm:$0x1]
    %v132 = vperm.slane %v130, 0
    %vm134 = vcmask 523264
    %v136 = vsel %vm134, %v120, 0
    %v139 = vsel %vm134, %v121, 0
    %141 = vmatpush.msra.mxu0 0.0
    %142 = vmatpush.msra.mxu0 0.0
    %143 = vmatpush.msra.mxu0 0.0
    %144 = vmatpush.msra.mxu0 0.0
    %145 = vmatpush.msra.mxu0 0.0
    %146 = vmatpush.msra.mxu0 0.0
    %147 = vmatpush.msra.mxu0 0.0
    %148 = vmatpush.msra.mxu0 0.0
    %149 = vmatpush.msra.mxu0 %v129
    %150 = vmatpush.msra.mxu0 %v128
    %151 = vmatpush.msra.mxu0 %v127
    %152 = vmatpush.msra.mxu0 %v126
    %153 = vmatpush.msra.mxu0 %v125
    %154 = vmatpush.msra.mxu0 %v124
    %155 = vmatpush.msra.mxu0 %v123
    %156 = vmatpush.msra.mxu0 %v122
    %157 = vmatmul.f32.gmra.mxu0 %v136
    %v158 = vpop.f32.mrf.mxu0
    %v159 = vadd.f32 %v132, %v158
    %160 = vmatmul.f32.gmra.mxu0 %v139
    %v161 = vpop.f32.mrf.mxu0
    %v162 = vadd.f32 %v132, %v161
    %163 = vdwg.mxu0
    %vm164 = vcmask 80896
    %165 = vst.msk [vmem:[#allocation2] sm:$0xff] %vm164, %v159
    %166 = vst.msk [vmem:[#allocation2 + $0x8] sm:$0xff] %vm164, %v162
    // Predicated region
    $region30: #{tpu_custom_call.1} parent=1 // pred_check
      _
    $region31: #{tpu_custom_call.1} parent=1 // pred_check_branch
      %168 = sbr.rel (0) target = $region33
    $region32: #{tpu_custom_call.1} parent=1 // pred_region
      %170 = vsyncadd [#allocation3], 128
      %s171 = sshll.u32 [#allocation2], 4
      %s172 = int_to_ptr.vmem [resolvable:$true] %s171
      %s173 = sshll.u32 %s7, 4
      %s174 = int_to_ptr.hbm [resolvable:$true] %s173
      %179 = dma.vmem_to_hbm [thread:$0]  %s172, 128, %s174, [#allocation3], 128, 128, 8
    $region33: #{tpu_custom_call.1} parent=1 // pred_fallthru
      _
    // Predicated region
    $region34: #{tpu_custom_call.1} parent=1 // pred_check
      _
    $region35: #{tpu_custom_call.1} parent=1 // pred_check_branch
      %181 = sbr.rel (0) target = $region37
    $region36: #{tpu_custom_call.1} parent=1 // pred_region
      %183 = dma.done [#allocation3], 256
    $region37: #{tpu_custom_call.1} parent=1 // pred_fallthru
      _
    %184 = vsyncpa [#allocation3], 1

</llo_original>
